<compile_context>
chip_gen: v5e
topology: v5e:2x2
jax: 0.10.0
libtpu: 0.0.40
codegen_flags: <defaults>
</compile_context>

<pallas_src>
import math

import jax
import jax.numpy as jnp
from jax.experimental import pallas as pl
from jax.experimental.pallas import tpu as pltpu

_LANE = 128
_TARGET_BLOCK_BYTES = 4 * 1024 * 1024   # ~4 MiB per block -> ~16 MiB VMEM working set
_MIN_SPLIT_BYTES = 1 * 1024 * 1024      # above this, force >=2 grid steps (v7x dual-TC)
_VMEM_LIMIT_BYTES = 32 * 1024 * 1024    # safe on v5e/v6e (128 MiB) and v7x (64 MiB)


def _sublane_multiple(dtype) -> int:
    # f32/i32 -> 8, bf16/f16 -> 16, int8/fp8 -> 32 (sub-32-bit packs along sublanes)
    return 8 * (4 // jnp.dtype(dtype).itemsize)


def _round_up(x: int, m: int) -> int:
    return ((x + m - 1) // m) * m


# ---------------------------------------------------------------------------
# Backward kernel: grad_input = neg_coeff * grad_output  (elementwise, VPU only)
# ---------------------------------------------------------------------------
def _neg_scale_kernel(neg_coeff_ref, g_ref, o_ref):
    # Negation is folded into the host-side scalar; multiply in the gradient
    # dtype so bf16 grads stay bf16 on v6e/v7x (HBM-bound either way).
    neg_c = neg_coeff_ref[0].astype(g_ref.dtype)
    o_ref[...] = (g_ref[...] * neg_c).astype(o_ref.dtype)


def _neg_scale_slab(slab, neg_coeff):
    """Run the Pallas kernel over a lane-dense [rows, 128] slab."""
    rows = slab.shape[0]
    itemsize = jnp.dtype(slab.dtype).itemsize
    sub = _sublane_multiple(slab.dtype)

    # ~4 MiB blocks, rows a multiple of the dtype's sublane packing.
    max_tile_rows = max(sub, (_TARGET_BLOCK_BYTES // (_LANE * itemsize)) // sub * sub)
    if rows > max_tile_rows:
        tile_rows = max_tile_rows                       # grid >= 2 automatically
    elif rows * _LANE * itemsize >= _MIN_SPLIT_BYTES:
        # Enough work to be worth splitting across both v7x TensorCores.
        tile_rows = _round_up(pl.cdiv(rows, 2), sub)
    else:
        tile_rows = _round_up(rows, sub)                # single block, small tensor

    grid = (pl.cdiv(rows, tile_rows),)
    neg_coeff_arr = jnp.asarray(neg_coeff, dtype=jnp.float32).reshape((1,))

    # TODO(synk): allow_input_fusion on the grad-slab input would let XLA fuse
    # the cotangent producer into the kernel and remove one HBM pass entirely.
    return pl.pallas_call(
        _neg_scale_kernel,
        out_shape=jax.ShapeDtypeStruct(slab.shape, slab.dtype),
        grid=grid,
        in_specs=[
            pl.BlockSpec(memory_space=pltpu.SMEM),               # neg_coeff scalar
            pl.BlockSpec((tile_rows, _LANE), lambda i: (i, 0)),  # grad slab
        ],
        out_specs=pl.BlockSpec((tile_rows, _LANE), lambda i: (i, 0)),
        input_output_aliases={1: 0},  # reuse the cotangent buffer for the output
        compiler_params=pltpu.CompilerParams(
            dimension_semantics=("parallel",),
            vmem_limit_bytes=_VMEM_LIMIT_BYTES,
        ),
        cost_estimate=pl.CostEstimate(
            flops=slab.size,
            transcendentals=0,
            bytes_accessed=2 * slab.size * itemsize,
        ),
    )(neg_coeff_arr, slab)


def _neg_scale_pallas(g, coeff):
    """Compute -coeff * g for any input shape/dtype."""
    orig_shape = g.shape
    n = g.size
    neg_coeff = -jnp.asarray(coeff, dtype=jnp.float32)

    if n == 0:
        return g

    rem = n % _LANE
    if rem == 0:
        # Zero-copy path: pure reshape into a lane-dense [rows, 128] slab.
        # A partial (non-sublane-multiple) last block is masked by Pallas.
        out = _neg_scale_slab(g.reshape(-1, _LANE), neg_coeff)
        return out.reshape(orig_shape)

    if n < _LANE:
        # Tiny tensor: not worth a kernel launch.
        return (g.astype(jnp.float32) * neg_coeff).astype(g.dtype).reshape(orig_shape)

    # Non-128-divisible size: kernel on the 128-aligned bulk, plain XLA on the
    # (<128-element) tail — avoids the old pad + full-array slice round trip.
    # TODO(synk): an in-kernel masked tail store would avoid the concatenate.
    flat = g.reshape(-1)
    bulk_n = n - rem
    bulk = _neg_scale_slab(flat[:bulk_n].reshape(-1, _LANE), neg_coeff)
    tail = (flat[bulk_n:].astype(jnp.float32) * neg_coeff).astype(g.dtype)
    return jnp.concatenate([bulk.reshape(-1), tail]).reshape(orig_shape)


# ---------------------------------------------------------------------------
# Gradient-reverse function: forward = identity (no kernel), backward = Pallas
# ---------------------------------------------------------------------------
@jax.custom_vjp
def gradient_reverse(x, coeff):
    del coeff
    return x


def _grl_fwd(x, coeff):
    return x, coeff


def _grl_bwd(coeff, g):
    # coeff gets a zero cotangent (PyTorch returns None for it).
    return _neg_scale_pallas(g, coeff), jnp.zeros_like(coeff)


gradient_reverse.defvjp(_grl_fwd, _grl_bwd)


# ---------------------------------------------------------------------------
# Module-equivalent wrapper with warm-start schedule state (host-side)
# ---------------------------------------------------------------------------
class WarmStartGradientReverseLayer:
    def __init__(self, alpha=1.0, lo=0.0, hi=1.0, max_iters=1000.0,
                 auto_step=False):
        self.alpha = alpha
        self.lo = lo
        self.hi = hi
        self.iter_num = 0
        self.max_iters = max_iters
        self.auto_step = auto_step

    def __call__(self, x):
        coeff = (
            2.0 * (self.hi - self.lo)
            / (1.0 + math.exp(-self.alpha * self.iter_num / self.max_iters))
            - (self.hi - self.lo) + self.lo
        )
        if self.auto_step:
            self.step()
        # traced f32 scalar -> no retrace/recompile as the schedule advances
        return gradient_reverse(x, jnp.float32(coeff))

    def step(self):
        self.iter_num += 1


# ---------------------------------------------------------------------------
if __name__ == "__main__":
    key = jax.random.PRNGKey(0)
    x = jax.random.normal(key, (2, 4, 16, 16), dtype=jnp.float32)  # NCHW

    layer = WarmStartGradientReverseLayer(alpha=1.0, lo=0.0, hi=1.0,
                                          max_iters=1000, auto_step=True)

    # forward: pure identity, no kernel launch
    y = jax.block_until_ready(layer(x))
    assert y.shape == x.shape and y.dtype == x.dtype
    assert bool(jnp.allclose(y, x)), "forward must be identity"

    # backward: exercises the Pallas gradient-reversal kernel (128-aligned path)
    coeff = 0.5
    g = jax.grad(lambda a: jnp.sum(gradient_reverse(a, jnp.float32(coeff))))(x)
    g = jax.block_until_ready(g)
    assert bool(jnp.allclose(g, -coeff * jnp.ones_like(x)))

    # warm-start schedule at iter 0 gives lambda = lo = 0 -> zero gradient
    g0 = jax.grad(lambda a: jnp.sum(gradient_reverse(a, jnp.float32(0.0))))(x)
    g0 = jax.block_until_ready(g0)
    assert bool(jnp.allclose(g0, jnp.zeros_like(x)))

    # non-128-divisible shape: bulk kernel + XLA tail path
    x2 = jax.random.normal(key, (5, 100), dtype=jnp.float32)
    g2 = jax.grad(lambda a: jnp.sum(gradient_reverse(a, jnp.float32(1.5))))(x2)
    g2 = jax.block_until_ready(g2)
    assert bool(jnp.allclose(g2, -1.5 * jnp.ones_like(x2)))

    # bf16 gradient: dtype-aware (16-row sublane) tiling path
    xb = jax.random.normal(key, (8, 32, 32), dtype=jnp.bfloat16)
    gb = jax.grad(
        lambda a: jnp.sum(gradient_reverse(a, jnp.float32(2.0)).astype(jnp.float32))
    )(xb)
    gb = jax.block_until_ready(gb)
    assert gb.dtype == jnp.bfloat16
    assert bool(jnp.allclose(gb.astype(jnp.float32),
                             -2.0 * jnp.ones((8, 32, 32), jnp.float32)))

    print("KERNEL_OK")
</pallas_src>

<mosaic_0001>
module attributes {stable_mosaic.version = 11 : i64} {
  func.func @_neg_scale_kernel(%arg0: i32, %arg1: memref<1xf32, #tpu.memory_space<smem>>, %arg2: memref<16x128xf32, #tpu.memory_space<vmem>>, %arg3: memref<16x128xf32, #tpu.memory_space<vmem>>) attributes {dimension_semantics = [#tpu.dimension_semantics<parallel>], iteration_bounds = array<i64: 1>, scalar_prefetch = 0 : i64, scratch_operands = 0 : i64, tpu.core_type = #tpu.core_type<tc>, window_params = [{transform_indices = @transform_0, window_bounds = array<i64: 1>}, {transform_indices = @transform_1, window_bounds = array<i64: 16, 128>}, {transform_indices = @transform_2, window_bounds = array<i64: 16, 128>}]} {
    %c0 = arith.constant 0 : index
    %0 = memref.load %arg1[%c0] : memref<1xf32, #tpu.memory_space<smem>>
    %c0_0 = arith.constant 0 : index
    %c0_1 = arith.constant 0 : index
    %1 = vector.load %arg2[%c0_0, %c0_1] : memref<16x128xf32, #tpu.memory_space<vmem>>, vector<16x128xf32>
    %2 = vector.broadcast %0 : f32 to vector<16x128xf32>
    %3 = arith.mulf %1, %2 : vector<16x128xf32>
    %c0_2 = arith.constant 0 : index
    %c0_3 = arith.constant 0 : index
    %4 = vector.load %arg3[%c0_2, %c0_3] : memref<16x128xf32, #tpu.memory_space<vmem>>, vector<16x128xf32>
    tpu.vector_store %arg3[%c0_2, %c0_3], %3 {strides = array<i32>} : memref<16x128xf32, #tpu.memory_space<vmem>>, vector<16x128xf32>,
    return
  }
  func.func @transform_0(%arg0: i32) -> i32 {
    %c0_i32 = arith.constant 0 : i32
    %c0_i32_0 = arith.constant 0 : i32
    return %c0_i32 : i32
  }
  func.func @transform_1(%arg0: i32) -> (i32, i32) {
    %c0_i32 = arith.constant 0 : i32
    %c0_i32_0 = arith.constant 0 : i32
    return %arg0, %c0_i32 : i32, i32
  }
  func.func @transform_2(%arg0: i32) -> (i32, i32) {
    %c0_i32 = arith.constant 0 : i32
    %c0_i32_0 = arith.constant 0 : i32
    return %arg0, %c0_i32 : i32, i32
  }
}

</mosaic_0001>

<llo_original>
// kernel: tpu_custom_call.1
$region0: #{tpu_custom_call.1}
  #allocation0 [shape = 'u32[]', space=smem, size = 0x4, offset = 0x4, fixed_abs, tag = 'smem constant byte address 0x4 - core index']
  #allocation1 [shape = 'u32[72,128]{1,0:T(1,128)}', space=vmem, size = 0x9000, scoped, tag = 'internal scratch']
  #allocation2 [shape = 'f32[1]{0:T(128)S(6)}', space=smem, size = 0x200, scoped, tag = 'scoped memory for tpu_custom_call.1']
  %s0 = inlined_call_operand.<no memory space> [shape: f32[1], index: 0, kind: input, shape index: {}]
  %s1 = inlined_call_operand.hbm [shape: f32[16,128], index: 1, kind: input, shape index: {}, may-alias: {1,2}]
  %s2 = inlined_call_operand.hbm [shape: f32[16,128], index: 2, kind: output, shape index: {}, may-alias: {1,2}]
  %s3 = sld [smem:[#allocation0]]
  $region22: #{tpu_custom_call.1} parent=0
    _
  %s5 = ssub.s32 1, %s3
  %s6 = scalar_select 0, %s5, %s3
  %7 = sst [smem:[#allocation2]] %s0
  $region1: #{tpu_custom_call.1} parent=0
    #allocation3 [shape = 'u8[8192]{0}', space=vmem, size = 0x2000, scoped, tag = 'input window, operand 1, single buffered']
    #allocation4 [shape = 's32[1]{0}', space=sflag, size = 0x4, scoped, tag = 'scoped memory for tpu_custom_call.1']
    #allocation5 [shape = 's32[1]{0}', space=sflag, size = 0x4, scoped, tag = 'scoped memory for tpu_custom_call.1']
    #allocation6 [shape = 'u8[8192]{0}', space=vmem, size = 0x2000, scoped, tag = 'output window, operand 0, single buffered']
    %8 = vsyncpa [#allocation4], 0
    %9 = vsyncpa [#allocation5], 0
    // Predicated region
    $region2: #{tpu_custom_call.1} parent=1 // pred_check
      _
    $region3: #{tpu_custom_call.1} parent=1 // pred_check_branch
      %11 = sbr.rel (0) target = $region5
    $region4: #{tpu_custom_call.1} parent=1 // pred_region
      _
    $region5: #{tpu_custom_call.1} parent=1 // pred_fallthru
      _
    // Predicated region
    $region6: #{tpu_custom_call.1} parent=1 // pred_check
      _
    $region7: #{tpu_custom_call.1} parent=1 // pred_check_branch
      %13 = sbr.rel (0) target = $region9
    $region8: #{tpu_custom_call.1} parent=1 // pred_region
      %15 = vsyncadd [#allocation4], 0
      %s16 = sshll.u32 %s1, 4
      %s17 = int_to_ptr.hbm [resolvable:$true] %s16
      %s18 = sshll.u32 [#allocation3], 4
      %s19 = int_to_ptr.vmem [resolvable:$true] %s18
      %24 = dma.hbm_to_vmem [thread:$0]  %s17, 256, %s19, [#allocation4], 128, 128, 8
    $region9: #{tpu_custom_call.1} parent=1 // pred_fallthru
      _
    // Predicated region
    $region10: #{tpu_custom_call.1} parent=1 // pred_check
      _
    $region11: #{tpu_custom_call.1} parent=1 // pred_check_branch
      %26 = sbr.rel (0) target = $region13
    $region12: #{tpu_custom_call.1} parent=1 // pred_region
      %28 = dma.done [#allocation4], 256
    $region13: #{tpu_custom_call.1} parent=1 // pred_fallthru
      _
    %s29 = sld [smem:[#allocation2]]
    %v30 = vld [vmem:[#allocation3] sm:$0xff]
    %v31 = vld [vmem:[#allocation3 + $0x8] sm:$0xff]
    %v32 = vstv %s29
    %v33 = vmul.f32 %v30, %v32
    %v34 = vmul.f32 %v31, %v32
    %35 = vst [vmem:[#allocation6] sm:$0xff] %v33
    %36 = vst [vmem:[#allocation6 + $0x8] sm:$0xff] %v34
    // Predicated region
    $region14: #{tpu_custom_call.1} parent=1 // pred_check
      _
    $region15: #{tpu_custom_call.1} parent=1 // pred_check_branch
      %38 = sbr.rel (0) target = $region17
    $region16: #{tpu_custom_call.1} parent=1 // pred_region
      %40 = vsyncadd [#allocation5], 0
      %s41 = sshll.u32 [#allocation6], 4
      %s42 = int_to_ptr.vmem [resolvable:$true] %s41
      %s43 = sshll.u32 %s2, 4
      %s44 = int_to_ptr.hbm [resolvable:$true] %s43
      %49 = dma.vmem_to_hbm [thread:$0]  %s42, 256, %s44, [#allocation5], 128, 128, 8
    $region17: #{tpu_custom_call.1} parent=1 // pred_fallthru
      _
    // Predicated region
    $region18: #{tpu_custom_call.1} parent=1 // pred_check
      _
    $region19: #{tpu_custom_call.1} parent=1 // pred_check_branch
      %51 = sbr.rel (0) target = $region21
    $region20: #{tpu_custom_call.1} parent=1 // pred_region
      %53 = dma.done [#allocation5], 256
    $region21: #{tpu_custom_call.1} parent=1 // pred_fallthru
      _
    %54 = vsyncpa [#allocation4], 1
    %55 = vsyncpa [#allocation5], 1

</llo_original>
